<compile_context>
chip_gen: v5e
topology: v5e:2x2
jax: 0.10.0
libtpu: 0.0.40
codegen_flags: <defaults>
</compile_context>

<pallas_src>
import functools

import jax
import jax.numpy as jnp
from jax.experimental import pallas as pl
from jax.experimental.pallas import tpu as pltpu


def _cdiv(a, b):
    return -(-a // b)


def _round_up(x, m):
    return ((x + m - 1) // m) * m


# --------------------------------------------------------------------------- #
# Kernels
# --------------------------------------------------------------------------- #
def _top1_kernel(x_ref, p_ref, top_ref, m_sc, idx_sc, *, num_classes):
    """Running row-wise top-1 over class chunks, computed on raw logits.

    Grid: (batch blocks ["parallel"], class chunks ["arbitrary", innermost]).
      x_ref  : (TB, TC) caller dtype   current logits tile
      p_ref  : (TB, 1)  caller dtype   exp(rowmax(logits))   (written on last chunk)
      top_ref: (TB, 1)  int32          first argmax class    (written on last chunk)
      m_sc   : (TB, 1)  f32 scratch    running row max
      idx_sc : (TB, 1)  i32 scratch    running argmax
    """
    k = pl.program_id(1)
    nc = pl.num_programs(1)

    @pl.when(k == 0)
    def _init():
        m_sc[...] = jnp.full_like(m_sc, -jnp.inf)
        idx_sc[...] = jnp.zeros_like(idx_sc)

    x = x_ref[...]                                      # native dtype, no (TB,TC) f32 temp
    tb, tc = x.shape
    lane = jax.lax.broadcasted_iota(jnp.int32, (tb, tc), dimension=1)
    gidx = lane + k * tc                                # global class index per lane

    if num_classes % tc != 0:                           # static: partial last class chunk
        if jnp.issubdtype(x.dtype, jnp.floating):
            fill = jnp.array(-jnp.inf, dtype=x.dtype)
        else:
            fill = jnp.array(jnp.iinfo(x.dtype).min, dtype=x.dtype)
        x = jnp.where(gidx < num_classes, x, fill)

    m_chunk = jnp.max(x, axis=-1, keepdims=True)        # (TB,1) native dtype, XLU reduce
    # First-index tie break; rows containing NaN still hit an in-range lane.
    hit = (x == m_chunk) | ((x != x) & (m_chunk != m_chunk))
    idx_chunk = jnp.min(
        jnp.where(hit, gidx, jnp.int32(2147483647)), axis=-1, keepdims=True
    )

    m_new = m_chunk.astype(jnp.float32)                 # only the (TB,1) row max is upcast
    m_prev = m_sc[...]
    # strictly greater -> ties keep the earlier (lower) class index, like jnp/torch
    better = (m_new > m_prev) | ((m_new != m_new) & (m_prev == m_prev))
    m_sc[...] = jnp.where(better, m_new, m_prev)
    idx_sc[...] = jnp.where(better, idx_chunk, idx_sc[...])

    @pl.when(k == nc - 1)
    def _finalize():
        # exp only on the (TB,1) running max -> O(B) transcendentals, not O(B*C)
        p_ref[...] = jnp.exp(m_sc[...]).astype(p_ref.dtype)
        top_ref[...] = idx_sc[...]


def _exp_kernel(x_ref, o_ref):
    """Elementwise exp (only for callers that really need the full prob tensor)."""
    o_ref[...] = jnp.exp(x_ref[...]).astype(o_ref.dtype)


# --------------------------------------------------------------------------- #
# Tiling heuristics (static, shape-driven)
# --------------------------------------------------------------------------- #
def _choose_tiles(B, C, itemsize, budget_bytes, want_two_steps=True):
    """Pick (TB, TC) so one input tile stays under budget_bytes (double-buffered)."""
    row_bytes = C * itemsize
    if 8 * row_bytes <= budget_bytes:
        # Full class dim fits with >= 8 rows: stream whole rows.
        tc = C                                          # block dim == array dim is legal
        rows = max(8, (budget_bytes // row_bytes // 8) * 8)
        if want_two_steps and B > 16:
            # keep >= 2 grid steps so the "parallel" batch axis feeds both v7x TCs
            rows = min(rows, _round_up((B + 1) // 2, 8))
        tb = B if rows >= B else rows
    else:
        # Very wide logits (e.g. LLM vocab): chunk the class axis.
        tb = B if B <= 256 else 256
        tc = max(128, (budget_bytes // (max(tb, 8) * itemsize) // 128) * 128)
        if tc >= C:
            tc = C
    return tb, tc


# --------------------------------------------------------------------------- #
# Wrappers
# --------------------------------------------------------------------------- #
@functools.partial(jax.jit, static_argnames=("vmem_budget_bytes",))
def predict_top1(logits, *, vmem_budget_bytes=6 << 20):
    """p, top = max(exp(logits), dim=1) without materializing exp(logits).

    Returns:
      p   : (B, 1) logits.dtype   max probability per row (= exp(rowmax(logits)))
      top : (B, 1) int32          argmax class index per row (first index on ties)
    """
    B, C = logits.shape
    dtype = logits.dtype
    itemsize = jnp.dtype(dtype).itemsize

    TB, TC = _choose_tiles(B, C, itemsize, vmem_budget_bytes)
    nb, nc = _cdiv(B, TB), _cdiv(C, TC)

    cost = pl.CostEstimate(
        flops=3 * B * C,                       # max + compare + select passes
        transcendentals=B,                     # one exp per row
        bytes_accessed=B * C * itemsize + B * (itemsize + 4),
    )

    kernel = functools.partial(_top1_kernel, num_classes=C)
    p, top = pl.pallas_call(
        kernel,
        out_shape=(
            jax.ShapeDtypeStruct((B, 1), dtype),
            jax.ShapeDtypeStruct((B, 1), jnp.int32),
        ),
        grid=(nb, nc),
        in_specs=[pl.BlockSpec((TB, TC), lambda i, k: (i, k))],
        out_specs=(
            pl.BlockSpec((TB, 1), lambda i, k: (i, 0)),
            pl.BlockSpec((TB, 1), lambda i, k: (i, 0)),
        ),
        scratch_shapes=[
            pltpu.VMEM((TB, 1), jnp.float32),
            pltpu.VMEM((TB, 1), jnp.int32),
        ],
        compiler_params=pltpu.CompilerParams(
            dimension_semantics=("parallel", "arbitrary"),
            vmem_limit_bytes=32 << 20,
        ),
        cost_estimate=cost,
    )(logits)
    return p, top


@functools.partial(jax.jit, static_argnames=("vmem_budget_bytes",))
def exp_probs(logits, *, vmem_budget_bytes=4 << 20):
    """Full exp(logits) — only for callers that genuinely need the (B, C) tensor."""
    B, C = logits.shape
    dtype = logits.dtype
    itemsize = jnp.dtype(dtype).itemsize

    TB, TC = _choose_tiles(B, C, itemsize, vmem_budget_bytes)
    nb, nc = _cdiv(B, TB), _cdiv(C, TC)

    cost = pl.CostEstimate(
        flops=0,
        transcendentals=B * C,
        bytes_accessed=2 * B * C * itemsize,
    )

    return pl.pallas_call(
        _exp_kernel,
        out_shape=jax.ShapeDtypeStruct((B, C), dtype),
        grid=(nb, nc),
        in_specs=[pl.BlockSpec((TB, TC), lambda i, k: (i, k))],
        out_specs=pl.BlockSpec((TB, TC), lambda i, k: (i, k)),
        compiler_params=pltpu.CompilerParams(
            dimension_semantics=("parallel", "parallel"),
            vmem_limit_bytes=32 << 20,
        ),
        cost_estimate=cost,
    )(logits)


class Network:
    """Minimal JAX port of the abstract PyTorch Network base class."""

    def __init__(self):
        self.best_accuracy = 0.0

    def forward(self, *inputs):
        # Abstract in the reference module (`pass` -> returns None).
        return None

    def predict(self, outputs, topk=1):
        # Reference: ps = exp(outputs); p, top = ps.topk(topk, dim=1)
        assert topk == 1, "kernel implements top-1 (as used in validate_/evaluate)"
        return predict_top1(outputs)


# --------------------------------------------------------------------------- #
# Self-test
# --------------------------------------------------------------------------- #
if __name__ == "__main__":
    key = jax.random.PRNGKey(0)
    net = Network()

    # --- primary small shape: batch=8, classes=16 (single block) ------------
    B, C = 8, 16
    logits = jax.random.normal(key, (B, C), dtype=jnp.float32)
    p, top = net.predict(logits)
    jax.block_until_ready((p, top))

    ref_probs = jnp.exp(logits)
    ref_p = jnp.max(ref_probs, axis=-1, keepdims=True)
    ref_top = jnp.argmax(logits, axis=-1, keepdims=True).astype(jnp.int32)
    assert p.shape == (B, 1) and top.shape == (B, 1)
    assert jnp.allclose(p, ref_p, rtol=1e-6, atol=1e-6)
    assert jnp.array_equal(top, ref_top)

    probs = exp_probs(logits)
    jax.block_until_ready(probs)
    assert probs.shape == (B, C)
    assert jnp.allclose(probs, ref_probs, rtol=1e-6, atol=1e-6)

    # --- multi-tile batch, full-class blocks (C=1000 not a mult of 128) -----
    key2 = jax.random.PRNGKey(1)
    B2, C2 = 300, 1000
    logits2 = jax.random.normal(key2, (B2, C2), dtype=jnp.float32)
    p2, top2 = predict_top1(logits2)                    # partial last batch block
    jax.block_until_ready((p2, top2))
    ref_p2 = jnp.max(jnp.exp(logits2), axis=-1, keepdims=True)
    ref_top2 = jnp.argmax(logits2, axis=-1, keepdims=True).astype(jnp.int32)
    assert jnp.allclose(p2, ref_p2, rtol=1e-6, atol=1e-6)
    assert jnp.array_equal(top2, ref_top2)

    # --- forced class-chunked path (tiny budget => TC=128, running max) -----
    p2c, top2c = predict_top1(logits2, vmem_budget_bytes=16 * 1024)
    jax.block_until_ready((p2c, top2c))
    assert jnp.allclose(p2c, ref_p2, rtol=1e-6, atol=1e-6)
    assert jnp.array_equal(top2c, ref_top2)

    probs2 = exp_probs(logits2, vmem_budget_bytes=256 * 1024)
    jax.block_until_ready(probs2)
    assert probs2.shape == (B2, C2)
    assert jnp.allclose(probs2, jnp.exp(logits2), rtol=1e-6, atol=1e-6)

    # --- bf16 stays bf16 on the wire (half the HBM read); top exact ---------
    logits3 = logits2.astype(jnp.bfloat16)
    p3, top3 = predict_top1(logits3)
    jax.block_until_ready((p3, top3))
    assert p3.dtype == jnp.bfloat16 and top3.dtype == jnp.int32
    ref_top3 = jnp.argmax(
        logits3.astype(jnp.float32), axis=-1, keepdims=True
    ).astype(jnp.int32)
    assert jnp.array_equal(top3, ref_top3)

    # --- NaN row guard: class index stays in range ---------------------------
    nan_logits = jnp.zeros((8, 16), jnp.float32).at[2, 3].set(jnp.nan)
    pn, topn = predict_top1(nan_logits)
    jax.block_until_ready((pn, topn))
    assert bool(jnp.all((topn >= 0) & (topn < 16)))

    print("KERNEL_OK")
</pallas_src>

<mosaic_0001>
module attributes {stable_mosaic.version = 11 : i64} {
  func.func @_top1_kernel(%arg0: i32, %arg1: i32, %arg2: memref<8x16xf32, #tpu.memory_space<vmem>>, %arg3: memref<8x1xf32, #tpu.memory_space<vmem>>, %arg4: memref<8x1xi32, #tpu.memory_space<vmem>>, %arg5: memref<8x1xf32, #tpu.memory_space<vmem>>, %arg6: memref<8x1xi32, #tpu.memory_space<vmem>>) attributes {dimension_semantics = [#tpu.dimension_semantics<parallel>, #tpu.dimension_semantics<arbitrary>], iteration_bounds = array<i64: 1, 1>, scalar_prefetch = 0 : i64, scratch_operands = 2 : i64, tpu.core_type = #tpu.core_type<tc>, window_params = [{transform_indices = @transform_0, window_bounds = array<i64: 8, 16>}, {transform_indices = @transform_1, window_bounds = array<i64: 8, 1>}, {transform_indices = @transform_2, window_bounds = array<i64: 8, 1>}]} {
    %c0_i32 = arith.constant 0 : i32
    %0 = arith.cmpi eq, %arg1, %c0_i32 : i32
    %1 = arith.extui %0 : i1 to i32
    %c0_i32_0 = arith.constant 0 : i32
    %2 = arith.cmpi ne, %1, %c0_i32_0 : i32
    scf.if %2 {
      %cst_13 = arith.constant 0xFF800000 : f32
      %35 = vector.broadcast %cst_13 : f32 to vector<8x1xf32>
      %c0_14 = arith.constant 0 : index
      %c0_15 = arith.constant 0 : index
      %36 = vector.load %arg5[%c0_14, %c0_15] : memref<8x1xf32, #tpu.memory_space<vmem>>, vector<8x1xf32>
      tpu.vector_store %arg5[%c0_14, %c0_15], %35 {strides = array<i32>} : memref<8x1xf32, #tpu.memory_space<vmem>>, vector<8x1xf32>,
      %c0_i32_16 = arith.constant 0 : i32
      %37 = vector.broadcast %c0_i32_16 : i32 to vector<8x1xi32>
      %c0_17 = arith.constant 0 : index
      %c0_18 = arith.constant 0 : index
      %38 = vector.load %arg6[%c0_17, %c0_18] : memref<8x1xi32, #tpu.memory_space<vmem>>, vector<8x1xi32>
      tpu.vector_store %arg6[%c0_17, %c0_18], %37 {strides = array<i32>} : memref<8x1xi32, #tpu.memory_space<vmem>>, vector<8x1xi32>,
    } else {
    }
    %c0 = arith.constant 0 : index
    %c0_1 = arith.constant 0 : index
    %3 = vector.load %arg2[%c0, %c0_1] : memref<8x16xf32, #tpu.memory_space<vmem>>, vector<8x16xf32>
    %4 = tpu.iota {dimensions = array<i32: 1>} : vector<8x16xi32>
    %c16_i32 = arith.constant 16 : i32
    %5 = arith.muli %arg1, %c16_i32 : i32
    %6 = vector.broadcast %5 : i32 to vector<8x16xi32>
    %7 = arith.addi %4, %6 : vector<8x16xi32>
    %cst = arith.constant dense<0xFF800000> : vector<8xf32>
    %8 = vector.multi_reduction <maximumf>, %3, %cst [1] : vector<8x16xf32> to vector<8xf32>
    %9 = vector.shape_cast %8 : vector<8xf32> to vector<8x1xf32>
    %10 = vector.broadcast %9 : vector<8x1xf32> to vector<8x16xf32>
    %11 = arith.cmpf oeq, %3, %10 : vector<8x16xf32>
    %12 = arith.cmpf one, %3, %3 : vector<8x16xf32>
    %13 = arith.cmpf one, %9, %9 : vector<8x1xf32>
    %14 = vector.broadcast %13 : vector<8x1xi1> to vector<8x16xi1>
    %15 = arith.andi %12, %14 : vector<8x16xi1>
    %16 = arith.ori %11, %15 : vector<8x16xi1>
    %c2147483647_i32 = arith.constant 2147483647 : i32
    %17 = vector.broadcast %c2147483647_i32 : i32 to vector<8x16xi32>
    %18 = arith.select %16, %7, %17 : vector<8x16xi1>, vector<8x16xi32>
    %cst_2 = arith.constant dense<2147483647> : vector<8xi32>
    %19 = vector.multi_reduction <minsi>, %18, %cst_2 [1] : vector<8x16xi32> to vector<8xi32>
    %20 = vector.shape_cast %19 : vector<8xi32> to vector<8x1xi32>
    %c0_3 = arith.constant 0 : index
    %c0_4 = arith.constant 0 : index
    %21 = vector.load %arg5[%c0_3, %c0_4] : memref<8x1xf32, #tpu.memory_space<vmem>>, vector<8x1xf32>
    %22 = arith.cmpf ogt, %9, %21 : vector<8x1xf32>
    %23 = arith.cmpf one, %9, %9 : vector<8x1xf32>
    %24 = arith.cmpf oeq, %21, %21 : vector<8x1xf32>
    %25 = arith.andi %23, %24 : vector<8x1xi1>
    %26 = arith.ori %22, %25 : vector<8x1xi1>
    %27 = arith.select %26, %9, %21 : vector<8x1xi1>, vector<8x1xf32>
    %c0_5 = arith.constant 0 : index
    %c0_6 = arith.constant 0 : index
    %28 = vector.load %arg5[%c0_5, %c0_6] : memref<8x1xf32, #tpu.memory_space<vmem>>, vector<8x1xf32>
    tpu.vector_store %arg5[%c0_5, %c0_6], %27 {strides = array<i32>} : memref<8x1xf32, #tpu.memory_space<vmem>>, vector<8x1xf32>,
    %c0_7 = arith.constant 0 : index
    %c0_8 = arith.constant 0 : index
    %29 = vector.load %arg6[%c0_7, %c0_8] : memref<8x1xi32, #tpu.memory_space<vmem>>, vector<8x1xi32>
    %30 = arith.select %26, %20, %29 : vector<8x1xi1>, vector<8x1xi32>
    %c0_9 = arith.constant 0 : index
    %c0_10 = arith.constant 0 : index
    %31 = vector.load %arg6[%c0_9, %c0_10] : memref<8x1xi32, #tpu.memory_space<vmem>>, vector<8x1xi32>
    tpu.vector_store %arg6[%c0_9, %c0_10], %30 {strides = array<i32>} : memref<8x1xi32, #tpu.memory_space<vmem>>, vector<8x1xi32>,
    %c0_i32_11 = arith.constant 0 : i32
    %32 = arith.cmpi eq, %arg1, %c0_i32_11 : i32
    %33 = arith.extui %32 : i1 to i32
    %c0_i32_12 = arith.constant 0 : i32
    %34 = arith.cmpi ne, %33, %c0_i32_12 : i32
    scf.if %34 {
      %c0_13 = arith.constant 0 : index
      %c0_14 = arith.constant 0 : index
      %35 = vector.load %arg5[%c0_13, %c0_14] : memref<8x1xf32, #tpu.memory_space<vmem>>, vector<8x1xf32>
      %36 = math.exp %35 : vector<8x1xf32>
      %c0_15 = arith.constant 0 : index
      %c0_16 = arith.constant 0 : index
      %37 = vector.load %arg3[%c0_15, %c0_16] : memref<8x1xf32, #tpu.memory_space<vmem>>, vector<8x1xf32>
      tpu.vector_store %arg3[%c0_15, %c0_16], %36 {strides = array<i32>} : memref<8x1xf32, #tpu.memory_space<vmem>>, vector<8x1xf32>,
      %c0_17 = arith.constant 0 : index
      %c0_18 = arith.constant 0 : index
      %38 = vector.load %arg6[%c0_17, %c0_18] : memref<8x1xi32, #tpu.memory_space<vmem>>, vector<8x1xi32>
      %c0_19 = arith.constant 0 : index
      %c0_20 = arith.constant 0 : index
      %39 = vector.load %arg4[%c0_19, %c0_20] : memref<8x1xi32, #tpu.memory_space<vmem>>, vector<8x1xi32>
      tpu.vector_store %arg4[%c0_19, %c0_20], %38 {strides = array<i32>} : memref<8x1xi32, #tpu.memory_space<vmem>>, vector<8x1xi32>,
    } else {
    }
    return
  }
  func.func @transform_0(%arg0: i32, %arg1: i32) -> (i32, i32) {
    %c0_i32 = arith.constant 0 : i32
    return %arg0, %arg1 : i32, i32
  }
  func.func @transform_1(%arg0: i32, %arg1: i32) -> (i32, i32) {
    %c0_i32 = arith.constant 0 : i32
    %c0_i32_0 = arith.constant 0 : i32
    return %arg0, %c0_i32 : i32, i32
  }
  func.func @transform_2(%arg0: i32, %arg1: i32) -> (i32, i32) {
    %c0_i32 = arith.constant 0 : i32
    %c0_i32_0 = arith.constant 0 : i32
    return %arg0, %c0_i32 : i32, i32
  }
}

</mosaic_0001>

<llo_original>
// kernel: predict_top1.1
$region0: #{predict_top1.1}
  #allocation0 [shape = 'u32[]', space=smem, size = 0x4, offset = 0x4, fixed_abs, tag = 'smem constant byte address 0x4 - core index']
  #allocation1 [shape = 'u32[72,128]{1,0:T(1,128)}', space=vmem, size = 0x9000, scoped, tag = 'internal scratch']
  #allocation2 [shape = 'f32[8,1]{1,0:T(8,128)}', space=vmem, size = 0x1000, scoped, tag = 'scratch operand']
  #allocation3 [shape = 's32[8,1]{1,0:T(8,128)}', space=vmem, size = 0x1000, scoped, tag = 'scratch operand']
  %s0 = inlined_call_operand.hbm [shape: f32[8,16], index: 0, kind: input, shape index: {}]
  %s1 = inlined_call_operand.vmem [shape: f32[8,1], index: 1, kind: output, shape index: {0}]
  %s2 = inlined_call_operand.vmem [shape: s32[8,1], index: 2, kind: output, shape index: {1}]
  %3 = xla_tuple %s1, %s2
  %s4 = sld [smem:[#allocation0]]
  $region34: #{predict_top1.1} parent=0
    _
  %s6 = ssub.s32 1, %s4
  %s7 = scalar_select 0, %s6, %s4
  $region1: #{predict_top1.1} parent=0
    #allocation4 [shape = 'u8[4096]{0}', space=vmem, size = 0x1000, scoped, tag = 'input window, operand 0, single buffered']
    #allocation5 [shape = 's32[1]{0}', space=sflag, size = 0x4, scoped, tag = 'scoped memory for predict_top1.1']
    %8 = vsyncpa [#allocation5], 0
    // Predicated region
    $region2: #{predict_top1.1} parent=1 // pred_check
      _
    $region3: #{predict_top1.1} parent=1 // pred_check_branch
      %10 = sbr.rel (0) target = $region5
    $region4: #{predict_top1.1} parent=1 // pred_region
      %12 = vsyncadd [#allocation5], 0
      %s14 = sshll.u32 %s0, 4
      %s15 = int_to_ptr.hbm [resolvable:$true] %s14
      %s16 = sshll.u32 [#allocation4], 4
      %s17 = int_to_ptr.vmem [resolvable:$true] %s16
      %19 = dma.hbm_to_vmem [thread:$0]  %s15, 128, %s17, [#allocation5]
    $region5: #{predict_top1.1} parent=1 // pred_fallthru
      _
    // Predicated region
    $region6: #{predict_top1.1} parent=1 // pred_check
      _
    $region7: #{predict_top1.1} parent=1 // pred_check_branch
      %21 = sbr.rel (0) target = $region9
    $region8: #{predict_top1.1} parent=1 // pred_region
      %23 = dma.done [#allocation5], 128
    $region9: #{predict_top1.1} parent=1 // pred_fallthru
      _
    %p24 = scmp.eq.s32.totalorder 0, 0
    // Predicated region
    $region10: #{predict_top1.1} parent=1 // pred_check
      %p25 = pneg %p24
    $region11: #{predict_top1.1} parent=1 // pred_check_branch
      %27 = sbr.rel (%p25) target = $region13
    $region12: #{predict_top1.1} parent=1 // pred_region
      %vm28 = vcmask 7168
      %29 = vst.msk [vmem:[#allocation2] sm:$0xff] %vm28, -inf
      %30 = vst.msk [vmem:[#allocation3] sm:$0xff] %vm28, 0
    $region13: #{predict_top1.1} parent=1 // pred_fallthru
      _
    %v31 = vld [vmem:[#allocation4] sm:$0xff]
    %v32 = vlaneseq
    %v33 = vand.u32 %v32, 127
    %s34 = smul.u32 0, 16
    %v35 = vstv %s34
    %v36 = vadd.s32 %v33, %v35
    %vm37 = vcmask 130048
    %v38 = vsel %vm37, %v31, -inf
    %39 = vmax.xlane.f32.xlu0 %v38
    %v40 = vpop.xlane.xlu0 %39
    %vm41 = vcmp.eq.f32.partialorder %v31, %v40
    %vm42 = vcmp.ne.f32.partialorder %v31, %v31
    %vm43 = vcmp.ne.f32.partialorder %v40, %v40
    %v44 = vsel %vm43, 1, 0
    %vm45 = vcmp.eq.s32.totalorder %v44, 1
    %vm46 = vmand %vm42, %vm45
    %vm47 = vmor %vm41, %vm46
    %v48 = vsel %vm47, %v36, 2147483647
    %v49 = vsel %vm37, %v48, 2147483647
    %v50 = vand.u32 %v49, 65535
    %v51 = vshra.s32 %v49, 16
    %v52 = vcvt.s32.f32 %v50
    %v53 = vcvt.s32.f32 %v51
    %54 = vmin.xlane.f32.xlu0 %v53
    %v55 = vpop.xlane.xlu0 %54
    %vm56 = vcmp.eq.f32.partialorder %v53, %v55
    %v57 = vsel %vm56, %v52, inf
    %58 = vmin.xlane.f32.xlu0 %v57
    %v59 = vpop.xlane.xlu0 %58
    %v60 = vcvt.f32.s32 %v59
    %v61 = vcvt.f32.s32 %v55
    %v62 = vshll.u32 %v61, 16
    %v63 = vadd.s32 %v62, %v60
    %v64 = vld [vmem:[#allocation2] sm:$0xff]
    %vm65 = vcmp.gt.f32.partialorder %v40, %v64
    %vm66 = vcmp.eq.f32.partialorder %v64, %v64
    %vm67 = vmand %vm43, %vm66
    %vm68 = vmor %vm65, %vm67
    %v69 = vsel %vm68, %v40, %v64
    %vm70 = vcmask 7168
    %71 = vst.msk [vmem:[#allocation2] sm:$0xff] %vm70, %v69
    %v72 = vld [vmem:[#allocation3] sm:$0xff]
    %v73 = vsel %vm68, %v63, %v72
    %74 = vst.msk [vmem:[#allocation3] sm:$0xff] %vm70, %v73
    // Predicated region
    $region14: #{predict_top1.1} parent=1 // pred_check
      %p75 = pneg %p24
    $region15: #{predict_top1.1} parent=1 // pred_check_branch
      %77 = sbr.rel (%p75) target = $region17
    $region16: #{predict_top1.1} parent=1 // pred_region
      %v78 = vld [vmem:[#allocation2] sm:$0xff]
      %v79 = vmul.f32 %v78, 1.442695
      %v80 = vpow.pop %v79
      %81 = vst.msk [vmem:[%s1] sm:$0xff] %vm70, %v80
      %v82 = vld [vmem:[#allocation3] sm:$0xff]
      %83 = vst.msk [vmem:[%s2] sm:$0xff] %vm70, %v82
    $region17: #{predict_top1.1} parent=1 // pred_fallthru
      _
    // Predicated region
    $region18: #{predict_top1.1} parent=1 // pred_check
      _
    $region19: #{predict_top1.1} parent=1 // pred_check_branch
      %85 = sbr.rel (0) target = $region21
    $region20: #{predict_top1.1} parent=1 // pred_region
      _
    $region21: #{predict_top1.1} parent=1 // pred_fallthru
      _
    // Predicated region
    $region22: #{predict_top1.1} parent=1 // pred_check
      _
    $region23: #{predict_top1.1} parent=1 // pred_check_branch
      %87 = sbr.rel (0) target = $region25
    $region24: #{predict_top1.1} parent=1 // pred_region
      _
    $region25: #{predict_top1.1} parent=1 // pred_fallthru
      _
    // Predicated region
    $region26: #{predict_top1.1} parent=1 // pred_check
      _
    $region27: #{predict_top1.1} parent=1 // pred_check_branch
      %89 = sbr.rel (0) target = $region29
    $region28: #{predict_top1.1} parent=1 // pred_region
      _
    $region29: #{predict_top1.1} parent=1 // pred_fallthru
      _
    // Predicated region
    $region30: #{predict_top1.1} parent=1 // pred_check
      _
    $region31: #{predict_top1.1} parent=1 // pred_check_branch
      %91 = sbr.rel (0) target = $region33
    $region32: #{predict_top1.1} parent=1 // pred_region
      _
    $region33: #{predict_top1.1} parent=1 // pred_fallthru
      _
    %92 = vsyncpa [#allocation5], 1

</llo_original>
